<compile_context>
chip_gen: v7x
topology: tpu7x:2x2x1
jax: 0.10.0
libtpu: 0.0.40
codegen_flags: <defaults>
</compile_context>

<pallas_src>
import functools

import jax
import jax.numpy as jnp
from jax.experimental import pallas as pl
from jax.experimental.pallas import tpu as pltpu

# f32 vreg = 8 sublanes x 128 lanes.
SUBLANE = 8
HID_PAD = 128   # hidden_size = 12  -> padded to one full lane width
OUT_PAD = 128   # output_size = 4   -> padded so the output store is unmasked


def _dqn_kernel(x_ref, w1_ref, b1_ref, w2_ref, b2_ref, out_ref):
    # x_ref:  (B_pad, in_size)
    # w1_ref: (in_size, HID_PAD),  b1_ref: (1, HID_PAD)
    # w2_ref: (HID_PAD, OUT_PAD),  b2_ref: (1, OUT_PAD)
    # out_ref: (B_pad, OUT_PAD)
    x = x_ref[...]
    h = jnp.dot(x, w1_ref[...], preferred_element_type=jnp.float32) + b1_ref[...]
    h = jnp.maximum(h, 0.0)  # ReLU; padded hidden columns stay exactly 0
    y = jnp.dot(h, w2_ref[...], preferred_element_type=jnp.float32) + b2_ref[...]
    out_ref[...] = y.astype(out_ref.dtype)


def pad_dqn_params(w1, b1, w2, b2):
    """Zero-pad the tiny feature dims to lane width ONCE; keep the padded params
    resident across calls so the padding cost is not paid per step.  Zero padding
    guarantees padded hidden units are 0 through bias+ReLU and contribute nothing
    to the padded output columns."""
    in_size, hidden = w1.shape
    _, out_size = w2.shape
    w1p = jnp.zeros((in_size, HID_PAD), jnp.float32).at[:, :hidden].set(w1)
    b1p = jnp.zeros((1, HID_PAD), jnp.float32).at[:, :hidden].set(b1.reshape(1, -1))
    w2p = jnp.zeros((HID_PAD, OUT_PAD), jnp.float32).at[:hidden, :out_size].set(w2)
    b2p = jnp.zeros((1, OUT_PAD), jnp.float32).at[:, :out_size].set(b2.reshape(1, -1))
    return w1p, b1p, w2p, b2p, out_size


@functools.partial(jax.jit, static_argnames=("out_size",))
def dqn_forward(x, w1p, b1p, w2p, b2p, *, out_size):
    """Pallas-backed DQN forward: relu(x @ w1 + b1) @ w_out + b_out.

    Single kernel invocation, no grid: all operands (a few KiB) live in VMEM.
    Batch is padded up to a multiple of 8 sublanes; feature dims arrive already
    padded to 128 lanes; the result is sliced back to (B, out_size).
    """
    B, _ = x.shape
    b_pad = max(SUBLANE, -(-B // SUBLANE) * SUBLANE)
    if b_pad != B:
        x = jnp.pad(x, ((0, b_pad - B), (0, 0)))

    out_padded = pl.pallas_call(
        _dqn_kernel,
        out_shape=jax.ShapeDtypeStruct((b_pad, OUT_PAD), jnp.float32),
        in_specs=[pl.BlockSpec(memory_space=pltpu.MemorySpace.VMEM)] * 5,
        out_specs=pl.BlockSpec(memory_space=pltpu.MemorySpace.VMEM),
    )(x, w1p, b1p, w2p, b2p)
    return out_padded[:B, :out_size]


def init_dqn_params(key, input_size, output_size, hidden_size):
    """PyTorch nn.Linear-style init (uniform +-1/sqrt(fan_in)).
    Weights stored as [in_features, out_features] so the kernel computes x @ W + b."""
    k1, k2, k3, k4, k5, k6 = jax.random.split(key, 6)
    lim1 = 1.0 / jnp.sqrt(input_size)
    lim2 = 1.0 / jnp.sqrt(hidden_size)
    w1 = jax.random.uniform(k1, (input_size, hidden_size), jnp.float32, -lim1, lim1)
    b1 = jax.random.uniform(k2, (hidden_size,), jnp.float32, -lim1, lim1)
    w2 = jax.random.uniform(k3, (hidden_size, output_size), jnp.float32, -lim2, lim2)
    b2 = jax.random.uniform(k4, (output_size,), jnp.float32, -lim2, lim2)
    # fc2 exists in the PyTorch module but is unused in forward(); init for parity only.
    _w_fc2 = jax.random.uniform(k5, (hidden_size, hidden_size), jnp.float32, -lim2, lim2)
    _b_fc2 = jax.random.uniform(k6, (hidden_size,), jnp.float32, -lim2, lim2)
    return w1, b1, w2, b2


if __name__ == "__main__":
    # Shapes consistent with the module: DQN(input_size=8, output_size=4,
    # hidden_size=12, hidden_layers=1).
    input_size, output_size, hidden_size = 8, 4, 12

    key = jax.random.PRNGKey(0)
    kx, kx2, kp = jax.random.split(key, 3)

    w1, b1, w2, b2 = init_dqn_params(kp, input_size, output_size, hidden_size)
    # Pad once; reuse padded params across every forward call.
    w1p, b1p, w2p, b2p, out_size = pad_dqn_params(w1, b1, w2, b2)

    def ref_forward(s):
        return jnp.maximum(s @ w1 + b1, 0.0) @ w2 + b2

    # Small batch of states (as in the original module usage).
    states = jax.random.normal(kx, (2, input_size), dtype=jnp.float32)
    out = jax.block_until_ready(
        dqn_forward(states, w1p, b1p, w2p, b2p, out_size=out_size))
    assert out.shape == (2, output_size)
    assert jnp.allclose(out, ref_forward(states), atol=1e-5, rtol=1e-5)

    # Replay-minibatch-sized batch: amortizes launch/DMA overhead and fills
    # sublanes/MXU rows (the only lever that moves wall-clock at these FLOP counts).
    states_big = jax.random.normal(kx2, (256, input_size), dtype=jnp.float32)
    out_big = jax.block_until_ready(
        dqn_forward(states_big, w1p, b1p, w2p, b2p, out_size=out_size))
    assert out_big.shape == (256, output_size)
    assert jnp.allclose(out_big, ref_forward(states_big), atol=1e-5, rtol=1e-5)

    print("KERNEL_OK")
</pallas_src>

<mosaic_0001>
module attributes {stable_mosaic.version = 11 : i64} {
  func.func @_dqn_kernel(%arg0: memref<8x8xf32, #tpu.memory_space<vmem>>, %arg1: memref<8x128xf32, #tpu.memory_space<vmem>>, %arg2: memref<1x128xf32, #tpu.memory_space<vmem>>, %arg3: memref<128x128xf32, #tpu.memory_space<vmem>>, %arg4: memref<1x128xf32, #tpu.memory_space<vmem>>, %arg5: memref<8x128xf32, #tpu.memory_space<vmem>>) attributes {dimension_semantics = [], scalar_prefetch = 0 : i64, scratch_operands = 0 : i64, tpu.core_type = #tpu.core_type<tc>} {
    %c0 = arith.constant 0 : index
    %c0_0 = arith.constant 0 : index
    %0 = vector.load %arg0[%c0, %c0_0] : memref<8x8xf32, #tpu.memory_space<vmem>>, vector<8x8xf32>
    %c0_1 = arith.constant 0 : index
    %c0_2 = arith.constant 0 : index
    %1 = vector.load %arg1[%c0_1, %c0_2] : memref<8x128xf32, #tpu.memory_space<vmem>>, vector<8x128xf32>
    %cst = arith.constant dense<0.000000e+00> : vector<8x128xf32>
    %2 = tpu.matmul %0, %1, %cst {dimension_numbers = #tpu.dot_dimension_numbers<[1], [0], [0], [1], [0, 0, 1, 1], [], []>} : vector<8x8xf32>, vector<8x128xf32>, vector<8x128xf32> -> vector<8x128xf32>
    %c0_3 = arith.constant 0 : index
    %c0_4 = arith.constant 0 : index
    %3 = vector.load %arg2[%c0_3, %c0_4] : memref<1x128xf32, #tpu.memory_space<vmem>>, vector<1x128xf32>
    %4 = vector.broadcast %3 : vector<1x128xf32> to vector<8x128xf32>
    %5 = arith.addf %2, %4 : vector<8x128xf32>
    %cst_5 = arith.constant 0.000000e+00 : f32
    %6 = vector.broadcast %cst_5 : f32 to vector<8x128xf32>
    %7 = arith.maximumf %5, %6 : vector<8x128xf32>
    %c0_6 = arith.constant 0 : index
    %c0_7 = arith.constant 0 : index
    %8 = vector.load %arg3[%c0_6, %c0_7] : memref<128x128xf32, #tpu.memory_space<vmem>>, vector<128x128xf32>
    %cst_8 = arith.constant dense<0.000000e+00> : vector<8x128xf32>
    %9 = tpu.matmul %7, %8, %cst_8 {dimension_numbers = #tpu.dot_dimension_numbers<[1], [0], [0], [1], [0, 0, 1, 1], [], []>} : vector<8x128xf32>, vector<128x128xf32>, vector<8x128xf32> -> vector<8x128xf32>
    %c0_9 = arith.constant 0 : index
    %c0_10 = arith.constant 0 : index
    %10 = vector.load %arg4[%c0_9, %c0_10] : memref<1x128xf32, #tpu.memory_space<vmem>>, vector<1x128xf32>
    %11 = vector.broadcast %10 : vector<1x128xf32> to vector<8x128xf32>
    %12 = arith.addf %9, %11 : vector<8x128xf32>
    %c0_11 = arith.constant 0 : index
    %c0_12 = arith.constant 0 : index
    %13 = vector.load %arg5[%c0_11, %c0_12] : memref<8x128xf32, #tpu.memory_space<vmem>>, vector<8x128xf32>
    tpu.vector_store %arg5[%c0_11, %c0_12], %12 {strides = array<i32>} : memref<8x128xf32, #tpu.memory_space<vmem>>, vector<8x128xf32>,
    return
  }
}

</mosaic_0001>

<llo_original>
// kernel: dqn_forward.1
$region0: #{dqn_forward.1}
  #allocation0 [shape = 'u32[]', space=smem, size = 0x4, offset = 0x4, fixed_abs, tag = 'smem constant byte address 0x4 - core index']
  #allocation1 [shape = 'u32[144,128]{1,0:T(1,128)}', space=vmem, size = 0x12000, scoped, tag = 'internal scratch']
  %s0 = inlined_call_operand.vmem [shape: f32[8,8], index: 0, kind: input, shape index: {}]
  %s1 = inlined_call_operand.vmem [shape: f32[8,128], index: 1, kind: input, shape index: {}]
  %s2 = inlined_call_operand.vmem [shape: f32[1,128], index: 2, kind: input, shape index: {}]
  %s3 = inlined_call_operand.hbm [shape: f32[128,128], index: 3, kind: input, shape index: {}]
  %s4 = inlined_call_operand.vmem [shape: f32[1,128], index: 4, kind: input, shape index: {}]
  %s5 = inlined_call_operand.vmem [shape: f32[8,128], index: 5, kind: output, shape index: {}]
  %s6 = sld [smem:[#allocation0]]
  $region34: #{dqn_forward.1} parent=0
    _
  %s8 = ssub.s32 1, %s6
  %s9 = scalar_select 0, %s8, %s6
  $region1: #{dqn_forward.1} parent=0
    #allocation2 [shape = 'u8[65536]{0}', space=vmem, size = 0x10000, scoped, tag = 'input window, operand 3, single buffered']
    #allocation3 [shape = 's32[1]{0}', space=sflag, size = 0x4, scoped, tag = 'scoped memory for dqn_forward.1']
    %10 = vsyncpa [#allocation3], 0
    // Predicated region
    $region2: #{dqn_forward.1} parent=1 // pred_check
      _
    $region3: #{dqn_forward.1} parent=1 // pred_check_branch
      %12 = sbr.rel (0) target = $region5
    $region4: #{dqn_forward.1} parent=1 // pred_region
      _
    $region5: #{dqn_forward.1} parent=1 // pred_fallthru
      _
    // Predicated region
    $region6: #{dqn_forward.1} parent=1 // pred_check
      _
    $region7: #{dqn_forward.1} parent=1 // pred_check_branch
      %14 = sbr.rel (0) target = $region9
    $region8: #{dqn_forward.1} parent=1 // pred_region
      _
    $region9: #{dqn_forward.1} parent=1 // pred_fallthru
      _
    // Predicated region
    $region10: #{dqn_forward.1} parent=1 // pred_check
      _
    $region11: #{dqn_forward.1} parent=1 // pred_check_branch
      %16 = sbr.rel (0) target = $region13
    $region12: #{dqn_forward.1} parent=1 // pred_region
      _
    $region13: #{dqn_forward.1} parent=1 // pred_fallthru
      _
    // Predicated region
    $region14: #{dqn_forward.1} parent=1 // pred_check
      _
    $region15: #{dqn_forward.1} parent=1 // pred_check_branch
      %18 = sbr.rel (0) target = $region17
    $region16: #{dqn_forward.1} parent=1 // pred_region
      %s20 = ssub.s32 2048, 2048
      %21 = vsyncadd [#allocation3], %s20
      %s22 = sshll.u32 [#allocation2], 4
      %s23 = int_to_ptr.vmem [resolvable:$true] %s22
      %28 = dma.hbm_to_vmem [thread:$0]  %s3, 2048, %s23, [#allocation3], 128, 128, 8
    $region17: #{dqn_forward.1} parent=1 // pred_fallthru
      _
    // Predicated region
    $region18: #{dqn_forward.1} parent=1 // pred_check
      _
    $region19: #{dqn_forward.1} parent=1 // pred_check_branch
      %30 = sbr.rel (0) target = $region21
    $region20: #{dqn_forward.1} parent=1 // pred_region
      _
    $region21: #{dqn_forward.1} parent=1 // pred_fallthru
      _
    // Predicated region
    $region22: #{dqn_forward.1} parent=1 // pred_check
      _
    $region23: #{dqn_forward.1} parent=1 // pred_check_branch
      %32 = sbr.rel (0) target = $region25
    $region24: #{dqn_forward.1} parent=1 // pred_region
      %33 = dma.done [#allocation3], 2048
    $region25: #{dqn_forward.1} parent=1 // pred_fallthru
      _
    %v34 = vld [vmem:[%s0] sm:$0xff]
    %v35 = vld [vmem:[%s1] sm:$0xff]
    %v36 = vld [vmem:[%s2] sm:$0x1]
    %v38 = vlaneseq
    %v39 = vshrl.u32 %v38, 7
    %v40 = vsub.s32 0, %v39
    %v41 = vrot.slane %v36, %v40
    %vm43 = vcmask 64512
    %v45 = vsel %vm43, %v34, 0
    %47 = vmatprep.subr.mxu0 0.0
    %48 = vmatpush1.msra.mxu0 %v35
    %49 = vmatprep.subr.mxu0 0.0
    %50 = vmatpush1.msra.mxu0 0.0
    %51 = vmatprep.subr.mxu0 0.0
    %52 = vmatpush1.msra.mxu0 0.0
    %53 = vmatprep.subr.mxu0 0.0
    %54 = vmatpush1.msra.mxu0 0.0
    %55 = vmatprep.subr.mxu0 0.0
    %56 = vmatpush1.msra.mxu0 0.0
    %57 = vmatprep.subr.mxu0 0.0
    %58 = vmatpush1.msra.mxu0 0.0
    %59 = vmatprep.subr.mxu0 0.0
    %60 = vmatpush1.msra.mxu0 0.0
    %61 = vmatprep.subr.mxu0 0.0
    %62 = vmatpush1.msra.mxu0 0.0
    %63 = vmatprep.subr.mxu0 0.0
    %64 = vmatpush1.msra.mxu0 0.0
    %65 = vmatprep.subr.mxu0 0.0
    %66 = vmatpush1.msra.mxu0 0.0
    %67 = vmatprep.subr.mxu0 0.0
    %68 = vmatpush1.msra.mxu0 0.0
    %69 = vmatprep.subr.mxu0 0.0
    %70 = vmatpush1.msra.mxu0 0.0
    %71 = vmatprep.subr.mxu0 0.0
    %72 = vmatpush1.msra.mxu0 0.0
    %73 = vmatprep.subr.mxu0 0.0
    %74 = vmatpush1.msra.mxu0 0.0
    %75 = vmatprep.subr.mxu0 0.0
    %76 = vmatpush1.msra.mxu0 0.0
    %77 = vmatprep.subr.mxu0 0.0
    %78 = vmatpush1.msra.mxu0 0.0
    %79 = vmatprep.subr.mxu0 0.0
    %80 = vmatpush1.msra.mxu0 0.0
    %81 = vmatprep.subr.mxu0 0.0
    %82 = vmatpush1.msra.mxu0 0.0
    %83 = vmatprep.subr.mxu0 0.0
    %84 = vmatpush1.msra.mxu0 0.0
    %85 = vmatprep.subr.mxu0 0.0
    %86 = vmatpush1.msra.mxu0 0.0
    %87 = vmatprep.subr.mxu0 0.0
    %88 = vmatpush1.msra.mxu0 0.0
    %89 = vmatprep.subr.mxu0 0.0
    %90 = vmatpush1.msra.mxu0 0.0
    %91 = vmatprep.subr.mxu0 0.0
    %92 = vmatpush1.msra.mxu0 0.0
    %93 = vmatprep.subr.mxu0 0.0
    %94 = vmatpush1.msra.mxu0 0.0
    %95 = vmatprep.subr.mxu0 0.0
    %96 = vmatpush1.msra.mxu0 0.0
    %97 = vmatprep.subr.mxu0 0.0
    %98 = vmatpush1.msra.mxu0 0.0
    %99 = vmatprep.subr.mxu0 0.0
    %100 = vmatpush1.msra.mxu0 0.0
    %101 = vmatprep.subr.mxu0 0.0
    %102 = vmatpush1.msra.mxu0 0.0
    %103 = vmatprep.subr.mxu0 0.0
    %104 = vmatpush1.msra.mxu0 0.0
    %105 = vmatprep.subr.mxu0 0.0
    %106 = vmatpush1.msra.mxu0 0.0
    %107 = vmatprep.subr.mxu0 0.0
    %108 = vmatpush1.msra.mxu0 0.0
    %109 = vmatprep.subr.mxu0 0.0
    %110 = vmatpush1.msra.mxu0 0.0
    %111 = vmatprep.mubr.f32.mxu0 0.0
    %112 = vmatmul.mubr.f32.gmra.mrb[0].mxu0 %v45
    %v113 = vpop.f32.mrb[0].mxu0
    %v114 = vadd.f32 %v41, %v113
    %v115 = vpop.f32.mrb[0].mxu0
    %116 = vdwg.mxu0
    %v117 = vmax.f32 %v114, 0.0
    %v118 = vld [vmem:[#allocation2] sm:$0xff]
    %v119 = vld [vmem:[#allocation2 + $0x8] sm:$0xff]
    %v120 = vld [vmem:[#allocation2 + $0x10] sm:$0xff]
    %v121 = vld [vmem:[#allocation2 + $0x18] sm:$0xff]
    %v122 = vld [vmem:[#allocation2 + $0x20] sm:$0xff]
    %v123 = vld [vmem:[#allocation2 + $0x28] sm:$0xff]
    %v124 = vld [vmem:[#allocation2 + $0x30] sm:$0xff]
    %v125 = vld [vmem:[#allocation2 + $0x38] sm:$0xff]
    %v126 = vld [vmem:[#allocation2 + $0x40] sm:$0xff]
    %v127 = vld [vmem:[#allocation2 + $0x48] sm:$0xff]
    %v128 = vld [vmem:[#allocation2 + $0x50] sm:$0xff]
    %v129 = vld [vmem:[#allocation2 + $0x58] sm:$0xff]
    %v130 = vld [vmem:[#allocation2 + $0x60] sm:$0xff]
    %v131 = vld [vmem:[#allocation2 + $0x68] sm:$0xff]
    %v132 = vld [vmem:[#allocation2 + $0x70] sm:$0xff]
    %v133 = vld [vmem:[#allocation2 + $0x78] sm:$0xff]
    %v134 = vld [vmem:[%s4] sm:$0x1]
    %v136 = vlaneseq
    %v137 = vshrl.u32 %v136, 7
    %v138 = vsub.s32 0, %v137
    %v139 = vrot.slane %v134, %v138
    %141 = vmatprep.subr.mxu0 0.0
    %142 = vmatpush1.msra.mxu0 %v118
    %143 = vmatprep.subr.mxu0 0.0
    %144 = vmatpush1.msra.mxu0 %v119
    %145 = vmatprep.subr.mxu0 0.0
    %146 = vmatpush1.msra.mxu0 %v120
    %147 = vmatprep.subr.mxu0 0.0
    %148 = vmatpush1.msra.mxu0 %v121
    %149 = vmatprep.subr.mxu0 0.0
    %150 = vmatpush1.msra.mxu0 %v122
    %151 = vmatprep.subr.mxu0 0.0
    %152 = vmatpush1.msra.mxu0 %v123
    %153 = vmatprep.subr.mxu0 0.0
    %154 = vmatpush1.msra.mxu0 %v124
    %155 = vmatprep.subr.mxu0 0.0
    %156 = vmatpush1.msra.mxu0 %v125
    %157 = vmatprep.subr.mxu0 0.0
    %158 = vmatpush1.msra.mxu0 %v126
    %159 = vmatprep.subr.mxu0 0.0
    %160 = vmatpush1.msra.mxu0 %v127
    %161 = vmatprep.subr.mxu0 0.0
    %162 = vmatpush1.msra.mxu0 %v128
    %163 = vmatprep.subr.mxu0 0.0
    %164 = vmatpush1.msra.mxu0 %v129
    %165 = vmatprep.subr.mxu0 0.0
    %166 = vmatpush1.msra.mxu0 %v130
    %167 = vmatprep.subr.mxu0 0.0
    %168 = vmatpush1.msra.mxu0 %v131
    %169 = vmatprep.subr.mxu0 0.0
    %170 = vmatpush1.msra.mxu0 %v132
    %171 = vmatprep.subr.mxu0 0.0
    %172 = vmatpush1.msra.mxu0 %v133
    %173 = vmatprep.subr.mxu0 0.0
    %174 = vmatpush1.msra.mxu0 0.0
    %175 = vmatprep.subr.mxu0 0.0
    %176 = vmatpush1.msra.mxu0 0.0
    %177 = vmatprep.subr.mxu0 0.0
    %178 = vmatpush1.msra.mxu0 0.0
    %179 = vmatprep.subr.mxu0 0.0
    %180 = vmatpush1.msra.mxu0 0.0
    %181 = vmatprep.subr.mxu0 0.0
    %182 = vmatpush1.msra.mxu0 0.0
    %183 = vmatprep.subr.mxu0 0.0
    %184 = vmatpush1.msra.mxu0 0.0
    %185 = vmatprep.subr.mxu0 0.0
    %186 = vmatpush1.msra.mxu0 0.0
    %187 = vmatprep.subr.mxu0 0.0
    %188 = vmatpush1.msra.mxu0 0.0
    %189 = vmatprep.subr.mxu0 0.0
    %190 = vmatpush1.msra.mxu0 0.0
    %191 = vmatprep.subr.mxu0 0.0
    %192 = vmatpush1.msra.mxu0 0.0
    %193 = vmatprep.subr.mxu0 0.0
    %194 = vmatpush1.msra.mxu0 0.0
    %195 = vmatprep.subr.mxu0 0.0
    %196 = vmatpush1.msra.mxu0 0.0
    %197 = vmatprep.subr.mxu0 0.0
    %198 = vmatpush1.msra.mxu0 0.0
    %199 = vmatprep.subr.mxu0 0.0
    %200 = vmatpush1.msra.mxu0 0.0
    %201 = vmatprep.subr.mxu0 0.0
    %202 = vmatpush1.msra.mxu0 0.0
    %203 = vmatprep.subr.mxu0 0.0
    %204 = vmatpush1.msra.mxu0 0.0
    %205 = vmatprep.mubr.f32.mxu0 0.0
    %206 = vmatmul.mubr.f32.gmra.mrb[0].mxu0 %v117
    %v207 = vpop.f32.mrb[0].mxu0
    %v208 = vadd.f32 %v139, %v207
    %v209 = vpop.f32.mrb[0].mxu0
    %210 = vdwg.mxu0
    %211 = vst [vmem:[%s5] sm:$0xff] %v208
    // Predicated region
    $region26: #{dqn_forward.1} parent=1 // pred_check
      _
    $region27: #{dqn_forward.1} parent=1 // pred_check_branch
      %213 = sbr.rel (0) target = $region29
    $region28: #{dqn_forward.1} parent=1 // pred_region
      _
    $region29: #{dqn_forward.1} parent=1 // pred_fallthru
      _
    // Predicated region
    $region30: #{dqn_forward.1} parent=1 // pred_check
      _
    $region31: #{dqn_forward.1} parent=1 // pred_check_branch
      %215 = sbr.rel (0) target = $region33
    $region32: #{dqn_forward.1} parent=1 // pred_region
      _
    $region33: #{dqn_forward.1} parent=1 // pred_fallthru
      _
    %216 = vsyncpa [#allocation3], 1

</llo_original>
